<compile_context>
chip_gen: v6e
topology: v6e:2x2x1
jax: 0.10.0
libtpu: 0.0.40
codegen_flags: <defaults>
</compile_context>

<pallas_src>
import functools

import jax
import jax.numpy as jnp
import numpy as np
from jax import lax
from jax.experimental import pallas as pl
from jax.experimental.pallas import tpu as pltpu


def _lane_reduce(a):
    """Reduce an (R, C) f32 tile to a (1, 128) lane-partial vector.

    Sum of the returned vector equals jnp.sum(a); the final cross-lane sum is
    done outside the kernel in plain JAX.
    """
    col = jnp.sum(a, axis=0, keepdims=True)                 # (1, C) sublane reduce
    c = col.shape[1]
    if c % 128 == 0 and c >= 128:
        acc = col[:, 0:128]
        for k in range(1, c // 128):                        # static slices, no relayout
            acc = acc + col[:, k * 128:(k + 1) * 128]
        return acc                                          # (1, 128)
    # small / unaligned vocab tile: full reduce, park the scalar in lane 0
    s = jnp.sum(col, axis=1, keepdims=True)                 # (1, 1)
    lane0 = lax.broadcasted_iota(jnp.int32, (1, 128), 1) == 0
    return jnp.where(lane0, s, 0.0)


def _word_smooth_kernel(clip_sim, margin, tau_word, smooth_remove_equal,
                        inp_ref, sim_ref, tgt_ref, msk_ref, val_ref, out_ref):
    j = pl.program_id(1)

    x = inp_ref[...].astype(jnp.float32)       # (TR, VT) log-probs
    sim = sim_ref[...].astype(jnp.float32)     # (TR, VT) gathered similarity rows
    tgt = tgt_ref[...]                         # (TR, 1) int32 targets
    msk = msk_ref[...].astype(jnp.float32)     # (TR, 1) mask
    val = val_ref[...].astype(jnp.float32)     # (TR, 1) 1.0 = real row, 0.0 = pad

    tr, vt = x.shape

    # ---- smooth_target = f(sim), purely elementwise (EUP handles the exp) ----
    if clip_sim:
        sim = jnp.where(sim >= margin, sim, 0.0)
    if tau_word:
        st = jnp.exp((sim - 1.0) * (1.0 / tau_word))
    else:
        st = sim - 1.0
    if smooth_remove_equal:
        st = jnp.where(sim < 1.0, st, 0.0)

    # ---- per-tile partial terms ----------------------------------------------
    den_t = st * msk                 # smooth_target * mask
    num_t = x * den_t                # logp * mask * smooth_target
    s1_t = st * val                  # stats exclude padded rows
    s2_t = s1_t * st

    # ML loss gather: one-hot select inside this vocab tile (no (TR,VT) iota
    # temporary; (1,VT) lane iota + offset, jnp.where instead of cast*mul).
    lane_ids = lax.broadcasted_iota(jnp.int32, (1, vt), 1) + j * vt
    sel = lane_ids == tgt                                   # (TR, VT)
    ml_t = jnp.where(sel, x, 0.0) * msk

    zeros = jnp.zeros((1, 128), jnp.float32)
    rows = [_lane_reduce(num_t), _lane_reduce(den_t), _lane_reduce(s1_t),
            _lane_reduce(s2_t), _lane_reduce(ml_t), zeros, zeros, zeros]
    # Single lane-dense (8,128) store per grid cell; no cross-grid accumulator.
    out_ref[...] = jnp.concatenate(rows, axis=0).reshape(1, 1, 8, 128)


def _round_up(x, m):
    return (x + m - 1) // m * m


def _pick_vocab_tile(v, target=2048):
    if v % 128 != 0 or v <= target:
        return v
    t = (target // 128) * 128
    while t >= 128:
        if v % t == 0:
            return t
        t -= 128
    return v


def word_smooth_criterion(inp, target, mask, sim_matrix, *, alpha,
                          tau_word=0.0, clip_sim=False, margin=0.0,
                          smooth_remove_equal=False, scores=None,
                          row_tile=256, vocab_tile=2048):
    """Forward pass of WordSmoothCriterion (full-vocab mode).

    inp:        (N, T, V) log-probabilities (float32 or bfloat16)
    target:     (N, >=T) int token ids
    mask:       (N, >=T) float mask
    sim_matrix: (V, V) word-similarity matrix
    Returns (ml_output, alpha*smooth_output + (1-alpha)*ml_output, stats-dict).
    """
    # TODO(synk): limited_vocab_sim (get_indices_vocab) needs host-side np.unique
    # per image group; only the full-vocab path is implemented here.
    N, T, V = inp.shape
    target = target[:, :T].astype(jnp.int32)
    mask = mask[:, :T].astype(jnp.float32)
    if scores is not None:                                  # scale_loss
        mask = mask * scores.reshape(N, 1).astype(jnp.float32)

    NT = N * T
    x2 = inp.reshape(NT, V)
    tgt = target.reshape(NT)
    msk = mask.reshape(NT)

    # Row gather of the similarity matrix done once by XLA; smoothing + all
    # reductions are fused into the Pallas kernel.
    sim_g = jnp.take(sim_matrix, tgt, axis=0)               # (NT, V)

    # ---- tiling / row padding ------------------------------------------------
    if NT <= row_tile:
        tr = _round_up(NT, 8)
    else:
        tr = _round_up(row_tile, 8)
    nt_pad = _round_up(NT, tr)
    pad = nt_pad - NT
    valid = jnp.concatenate([jnp.ones((NT,), jnp.float32),
                             jnp.zeros((pad,), jnp.float32)])
    if pad:
        x2 = jnp.concatenate([x2, jnp.zeros((pad, V), x2.dtype)], axis=0)
        sim_g = jnp.concatenate([sim_g, jnp.zeros((pad, V), sim_g.dtype)], axis=0)
        tgt = jnp.concatenate([tgt, jnp.zeros((pad,), jnp.int32)])
        msk_p = jnp.concatenate([msk, jnp.zeros((pad,), jnp.float32)])
    else:
        msk_p = msk

    vt = _pick_vocab_tile(V, vocab_tile)
    grid = (nt_pad // tr, V // vt)

    kernel = functools.partial(_word_smooth_kernel, bool(clip_sim), float(margin),
                               float(tau_word), bool(smooth_remove_equal))

    bytes_accessed = int(x2.size * x2.dtype.itemsize
                         + sim_g.size * sim_g.dtype.itemsize
                         + 3 * nt_pad * 4
                         + grid[0] * grid[1] * 8 * 128 * 4)
    cost = pl.CostEstimate(flops=int(12 * nt_pad * V),
                           transcendentals=int(nt_pad * V) if tau_word else 0,
                           bytes_accessed=bytes_accessed)

    partials = pl.pallas_call(
        kernel,
        out_shape=jax.ShapeDtypeStruct((grid[0], grid[1], 8, 128), jnp.float32),
        grid_spec=pltpu.PrefetchScalarGridSpec(
            num_scalar_prefetch=0,
            grid=grid,
            in_specs=[
                pl.BlockSpec((tr, vt), lambda i, j: (i, j)),   # log-probs
                pl.BlockSpec((tr, vt), lambda i, j: (i, j)),   # gathered sim rows
                pl.BlockSpec((tr, 1), lambda i, j: (i, 0)),    # target ids
                pl.BlockSpec((tr, 1), lambda i, j: (i, 0)),    # mask
                pl.BlockSpec((tr, 1), lambda i, j: (i, 0)),    # valid-row flag
            ],
            out_specs=pl.BlockSpec((1, 1, 8, 128), lambda i, j: (i, j, 0, 0)),
        ),
        compiler_params=pltpu.CompilerParams(
            dimension_semantics=("parallel", "parallel")),
        cost_estimate=cost,
    )(x2, sim_g, tgt.reshape(nt_pad, 1), msk_p.reshape(nt_pad, 1),
      valid.reshape(nt_pad, 1))

    # Final (tiny) reductions + scalar math in plain JAX.
    totals = jnp.sum(partials[:, :, :5, :], axis=(0, 1, 3))   # (5,)
    num_sm, den_sm, s1, s2, ml_gather = (totals[0], totals[1], totals[2],
                                         totals[3], totals[4])

    mask_sum = jnp.sum(msk)
    ml_output = -ml_gather / mask_sum            # module asserts sum(mask) > 0

    cnt = float(NT * V)
    word_mean = s1 / cnt
    word_std = jnp.sqrt(jnp.maximum(s2 / cnt - word_mean * word_mean, 0.0))

    smooth_num = -num_sm
    output = jnp.where(den_sm > 0, smooth_num / den_sm, smooth_num)
    combined = alpha * output + (1.0 - alpha) * ml_output
    stats = {"word_mean": word_mean, "word_std": word_std}
    return ml_output, combined, stats


def _reference(inp, target, mask, sim_matrix, *, alpha, tau_word, clip_sim,
               margin, smooth_remove_equal, scores=None):
    """Pure-JAX reference mirroring the PyTorch forward (full-vocab mode)."""
    N, T, V = inp.shape
    target = target[:, :T]
    mask = mask[:, :T].astype(jnp.float32)
    if scores is not None:
        mask = mask * scores.reshape(N, 1)
    x2 = inp.reshape(-1, V).astype(jnp.float32)
    tgt = target.reshape(-1)
    msk = mask.reshape(-1, 1)

    ml = jnp.sum(-jnp.take_along_axis(x2, tgt[:, None], axis=1) * msk) / jnp.sum(msk)

    sim = sim_matrix[tgt]                                   # (NT, V)
    if clip_sim:
        sim = sim * (sim >= margin).astype(jnp.float32)
    if tau_word:
        st = jnp.exp((sim - 1.0) / tau_word)
    else:
        st = sim - 1.0
    if smooth_remove_equal:
        st = st * (sim < 1.0).astype(jnp.float32)

    word_mean = jnp.mean(st)
    word_std = jnp.std(st)

    num = jnp.sum(-x2 * msk * st)
    den = jnp.sum(st * msk)
    out = jnp.where(den > 0, num / den, num)
    return ml, alpha * out + (1.0 - alpha) * ml, word_mean, word_std


if __name__ == "__main__":
    key = jax.random.PRNGKey(0)
    N, T, V = 8, 8, 32            # 2 images x 4 captions, seq 8, vocab 32
    k1, k2, k3, k4 = jax.random.split(key, 4)

    logits = jax.random.normal(k1, (N, T, V), dtype=jnp.float32)
    logp = jax.nn.log_softmax(logits, axis=-1)
    target = jax.random.randint(k2, (N, T + 2), 0, V, dtype=jnp.int32)  # longer than T, gets sliced
    mask = (jax.random.uniform(k3, (N, T + 2)) > 0.3).astype(jnp.float32)
    mask = mask.at[:, 0].set(1.0)                           # non-zero denominator

    emb = jax.random.normal(k4, (V, 16), dtype=jnp.float32)
    emb = emb / jnp.linalg.norm(emb, axis=1, keepdims=True)
    sim_matrix = emb @ emb.T                                # cosine similarities
    sim_matrix = sim_matrix * (1.0 - jnp.eye(V)) + jnp.eye(V)   # exact 1.0 diagonal

    opts = dict(alpha=0.7, tau_word=0.3, clip_sim=True, margin=0.1,
                smooth_remove_equal=True)

    ml, combined, stats = word_smooth_criterion(logp, target, mask, sim_matrix, **opts)
    jax.block_until_ready(combined)

    ml_r, comb_r, mean_r, std_r = _reference(logp, target, mask, sim_matrix, **opts)
    np.testing.assert_allclose(np.asarray(ml), np.asarray(ml_r), rtol=1e-5, atol=1e-5)
    np.testing.assert_allclose(np.asarray(combined), np.asarray(comb_r), rtol=1e-5, atol=1e-5)
    np.testing.assert_allclose(np.asarray(stats["word_mean"]), np.asarray(mean_r), rtol=1e-5, atol=1e-6)
    np.testing.assert_allclose(np.asarray(stats["word_std"]), np.asarray(std_r), rtol=1e-5, atol=1e-6)
    print("KERNEL_OK")
</pallas_src>

<mosaic_0001>
module attributes {stable_mosaic.version = 11 : i64} {
  func.func @_word_smooth_kernel(%arg0: i32, %arg1: i32, %arg2: memref<64x32xf32, #tpu.memory_space<vmem>>, %arg3: memref<64x32xf32, #tpu.memory_space<vmem>>, %arg4: memref<64x1xi32, #tpu.memory_space<vmem>>, %arg5: memref<64x1xf32, #tpu.memory_space<vmem>>, %arg6: memref<64x1xf32, #tpu.memory_space<vmem>>, %arg7: memref<1x1x8x128xf32, #tpu.memory_space<vmem>>) attributes {dimension_semantics = [#tpu.dimension_semantics<parallel>, #tpu.dimension_semantics<parallel>], iteration_bounds = array<i64: 1, 1>, scalar_prefetch = 0 : i64, scratch_operands = 0 : i64, tpu.core_type = #tpu.core_type<tc>, window_params = [{transform_indices = @transform_0, window_bounds = array<i64: 64, 32>}, {transform_indices = @transform_1, window_bounds = array<i64: 64, 32>}, {transform_indices = @transform_2, window_bounds = array<i64: 64, 1>}, {transform_indices = @transform_3, window_bounds = array<i64: 64, 1>}, {transform_indices = @transform_4, window_bounds = array<i64: 64, 1>}, {transform_indices = @transform_5, window_bounds = array<i64: 1, 1, 8, 128>}]} {
    %c0 = arith.constant 0 : index
    %c0_0 = arith.constant 0 : index
    %0 = vector.load %arg2[%c0, %c0_0] : memref<64x32xf32, #tpu.memory_space<vmem>>, vector<64x32xf32>
    %c0_1 = arith.constant 0 : index
    %c0_2 = arith.constant 0 : index
    %1 = vector.load %arg3[%c0_1, %c0_2] : memref<64x32xf32, #tpu.memory_space<vmem>>, vector<64x32xf32>
    %c0_3 = arith.constant 0 : index
    %c0_4 = arith.constant 0 : index
    %2 = vector.load %arg4[%c0_3, %c0_4] : memref<64x1xi32, #tpu.memory_space<vmem>>, vector<64x1xi32>
    %c0_5 = arith.constant 0 : index
    %c0_6 = arith.constant 0 : index
    %3 = vector.load %arg5[%c0_5, %c0_6] : memref<64x1xf32, #tpu.memory_space<vmem>>, vector<64x1xf32>
    %c0_7 = arith.constant 0 : index
    %c0_8 = arith.constant 0 : index
    %4 = vector.load %arg6[%c0_7, %c0_8] : memref<64x1xf32, #tpu.memory_space<vmem>>, vector<64x1xf32>
    %cst = arith.constant 1.000000e-01 : f32
    %5 = vector.broadcast %cst : f32 to vector<64x32xf32>
    %6 = arith.cmpf oge, %1, %5 : vector<64x32xf32>
    %cst_9 = arith.constant 0.000000e+00 : f32
    %7 = vector.broadcast %cst_9 : f32 to vector<64x32xf32>
    %8 = arith.select %6, %1, %7 : vector<64x32xi1>, vector<64x32xf32>
    %cst_10 = arith.constant 1.000000e+00 : f32
    %9 = vector.broadcast %cst_10 : f32 to vector<64x32xf32>
    %10 = arith.subf %8, %9 : vector<64x32xf32>
    %cst_11 = arith.constant 3.33333325 : f32
    %11 = vector.broadcast %cst_11 : f32 to vector<64x32xf32>
    %12 = arith.mulf %10, %11 : vector<64x32xf32>
    %13 = math.exp %12 : vector<64x32xf32>
    %cst_12 = arith.constant 1.000000e+00 : f32
    %14 = vector.broadcast %cst_12 : f32 to vector<64x32xf32>
    %15 = arith.cmpf olt, %8, %14 : vector<64x32xf32>
    %cst_13 = arith.constant 0.000000e+00 : f32
    %16 = vector.broadcast %cst_13 : f32 to vector<64x32xf32>
    %17 = arith.select %15, %13, %16 : vector<64x32xi1>, vector<64x32xf32>
    %18 = vector.broadcast %3 : vector<64x1xf32> to vector<64x32xf32>
    %19 = arith.mulf %17, %18 : vector<64x32xf32>
    %20 = arith.mulf %0, %19 : vector<64x32xf32>
    %21 = vector.broadcast %4 : vector<64x1xf32> to vector<64x32xf32>
    %22 = arith.mulf %17, %21 : vector<64x32xf32>
    %23 = arith.mulf %22, %17 : vector<64x32xf32>
    %24 = tpu.iota {dimensions = array<i32: 1>} : vector<1x32xi32>
    %c32_i32 = arith.constant 32 : i32
    %25 = arith.muli %arg1, %c32_i32 : i32
    %26 = vector.broadcast %25 : i32 to vector<1x32xi32>
    %27 = arith.addi %24, %26 : vector<1x32xi32>
    %28 = vector.broadcast %27 : vector<1x32xi32> to vector<64x32xi32>
    %29 = vector.broadcast %2 : vector<64x1xi32> to vector<64x32xi32>
    %30 = arith.cmpi eq, %28, %29 : vector<64x32xi32>
    %cst_14 = arith.constant 0.000000e+00 : f32
    %31 = vector.broadcast %cst_14 : f32 to vector<64x32xf32>
    %32 = arith.select %30, %0, %31 : vector<64x32xi1>, vector<64x32xf32>
    %33 = vector.broadcast %3 : vector<64x1xf32> to vector<64x32xf32>
    %34 = arith.mulf %32, %33 : vector<64x32xf32>
    %cst_15 = arith.constant 0.000000e+00 : f32
    %35 = vector.broadcast %cst_15 : f32 to vector<1x128xf32>
    %cst_16 = arith.constant dense<0.000000e+00> : vector<32xf32>
    %36 = vector.multi_reduction <add>, %20, %cst_16 [0] : vector<64x32xf32> to vector<32xf32>
    %37 = vector.shape_cast %36 : vector<32xf32> to vector<1x32xf32>
    %cst_17 = arith.constant dense<0.000000e+00> : vector<1xf32>
    %38 = vector.multi_reduction <add>, %37, %cst_17 [1] : vector<1x32xf32> to vector<1xf32>
    %39 = vector.shape_cast %38 : vector<1xf32> to vector<1x1xf32>
    %40 = tpu.iota {dimensions = array<i32: 1>} : vector<1x128xi32>
    %c0_i32 = arith.constant 0 : i32
    %41 = vector.broadcast %c0_i32 : i32 to vector<1x128xi32>
    %42 = arith.cmpi eq, %40, %41 : vector<1x128xi32>
    %cst_18 = arith.constant 0.000000e+00 : f32
    %43 = vector.shape_cast %39 : vector<1x1xf32> to vector<1x1xf32>
    %44 = vector.broadcast %43 : vector<1x1xf32> to vector<1x128xf32>
    %45 = vector.broadcast %cst_18 : f32 to vector<1x128xf32>
    %46 = arith.select %42, %44, %45 : vector<1x128xi1>, vector<1x128xf32>
    %cst_19 = arith.constant dense<0.000000e+00> : vector<32xf32>
    %47 = vector.multi_reduction <add>, %19, %cst_19 [0] : vector<64x32xf32> to vector<32xf32>
    %48 = vector.shape_cast %47 : vector<32xf32> to vector<1x32xf32>
    %cst_20 = arith.constant dense<0.000000e+00> : vector<1xf32>
    %49 = vector.multi_reduction <add>, %48, %cst_20 [1] : vector<1x32xf32> to vector<1xf32>
    %50 = vector.shape_cast %49 : vector<1xf32> to vector<1x1xf32>
    %51 = tpu.iota {dimensions = array<i32: 1>} : vector<1x128xi32>
    %c0_i32_21 = arith.constant 0 : i32
    %52 = vector.broadcast %c0_i32_21 : i32 to vector<1x128xi32>
    %53 = arith.cmpi eq, %51, %52 : vector<1x128xi32>
    %cst_22 = arith.constant 0.000000e+00 : f32
    %54 = vector.shape_cast %50 : vector<1x1xf32> to vector<1x1xf32>
    %55 = vector.broadcast %54 : vector<1x1xf32> to vector<1x128xf32>
    %56 = vector.broadcast %cst_22 : f32 to vector<1x128xf32>
    %57 = arith.select %53, %55, %56 : vector<1x128xi1>, vector<1x128xf32>
    %cst_23 = arith.constant dense<0.000000e+00> : vector<32xf32>
    %58 = vector.multi_reduction <add>, %22, %cst_23 [0] : vector<64x32xf32> to vector<32xf32>
    %59 = vector.shape_cast %58 : vector<32xf32> to vector<1x32xf32>
    %cst_24 = arith.constant dense<0.000000e+00> : vector<1xf32>
    %60 = vector.multi_reduction <add>, %59, %cst_24 [1] : vector<1x32xf32> to vector<1xf32>
    %61 = vector.shape_cast %60 : vector<1xf32> to vector<1x1xf32>
    %62 = tpu.iota {dimensions = array<i32: 1>} : vector<1x128xi32>
    %c0_i32_25 = arith.constant 0 : i32
    %63 = vector.broadcast %c0_i32_25 : i32 to vector<1x128xi32>
    %64 = arith.cmpi eq, %62, %63 : vector<1x128xi32>
    %cst_26 = arith.constant 0.000000e+00 : f32
    %65 = vector.shape_cast %61 : vector<1x1xf32> to vector<1x1xf32>
    %66 = vector.broadcast %65 : vector<1x1xf32> to vector<1x128xf32>
    %67 = vector.broadcast %cst_26 : f32 to vector<1x128xf32>
    %68 = arith.select %64, %66, %67 : vector<1x128xi1>, vector<1x128xf32>
    %cst_27 = arith.constant dense<0.000000e+00> : vector<32xf32>
    %69 = vector.multi_reduction <add>, %23, %cst_27 [0] : vector<64x32xf32> to vector<32xf32>
    %70 = vector.shape_cast %69 : vector<32xf32> to vector<1x32xf32>
    %cst_28 = arith.constant dense<0.000000e+00> : vector<1xf32>
    %71 = vector.multi_reduction <add>, %70, %cst_28 [1] : vector<1x32xf32> to vector<1xf32>
    %72 = vector.shape_cast %71 : vector<1xf32> to vector<1x1xf32>
    %73 = tpu.iota {dimensions = array<i32: 1>} : vector<1x128xi32>
    %c0_i32_29 = arith.constant 0 : i32
    %74 = vector.broadcast %c0_i32_29 : i32 to vector<1x128xi32>
    %75 = arith.cmpi eq, %73, %74 : vector<1x128xi32>
    %cst_30 = arith.constant 0.000000e+00 : f32
    %76 = vector.shape_cast %72 : vector<1x1xf32> to vector<1x1xf32>
    %77 = vector.broadcast %76 : vector<1x1xf32> to vector<1x128xf32>
    %78 = vector.broadcast %cst_30 : f32 to vector<1x128xf32>
    %79 = arith.select %75, %77, %78 : vector<1x128xi1>, vector<1x128xf32>
    %cst_31 = arith.constant dense<0.000000e+00> : vector<32xf32>
    %80 = vector.multi_reduction <add>, %34, %cst_31 [0] : vector<64x32xf32> to vector<32xf32>
    %81 = vector.shape_cast %80 : vector<32xf32> to vector<1x32xf32>
    %cst_32 = arith.constant dense<0.000000e+00> : vector<1xf32>
    %82 = vector.multi_reduction <add>, %81, %cst_32 [1] : vector<1x32xf32> to vector<1xf32>
    %83 = vector.shape_cast %82 : vector<1xf32> to vector<1x1xf32>
    %84 = tpu.iota {dimensions = array<i32: 1>} : vector<1x128xi32>
    %c0_i32_33 = arith.constant 0 : i32
    %85 = vector.broadcast %c0_i32_33 : i32 to vector<1x128xi32>
    %86 = arith.cmpi eq, %84, %85 : vector<1x128xi32>
    %cst_34 = arith.constant 0.000000e+00 : f32
    %87 = vector.shape_cast %83 : vector<1x1xf32> to vector<1x1xf32>
    %88 = vector.broadcast %87 : vector<1x1xf32> to vector<1x128xf32>
    %89 = vector.broadcast %cst_34 : f32 to vector<1x128xf32>
    %90 = arith.select %86, %88, %89 : vector<1x128xi1>, vector<1x128xf32>
    %91 = tpu.concatenate %46, %57, %68, %79, %90, %35, %35, %35 in 0 : vector<1x128xf32>, vector<1x128xf32>, vector<1x128xf32>, vector<1x128xf32>, vector<1x128xf32>, vector<1x128xf32>, vector<1x128xf32>, vector<1x128xf32> -> vector<8x128xf32>
    %92 = vector.shape_cast %91 : vector<8x128xf32> to vector<1x1x8x128xf32>
    %c0_35 = arith.constant 0 : index
    %c0_36 = arith.constant 0 : index
    %c0_37 = arith.constant 0 : index
    %c0_38 = arith.constant 0 : index
    %93 = vector.load %arg7[%c0_35, %c0_36, %c0_37, %c0_38] : memref<1x1x8x128xf32, #tpu.memory_space<vmem>>, vector<1x1x8x128xf32>
    tpu.vector_store %arg7[%c0_35, %c0_36, %c0_37, %c0_38], %92 {strides = array<i32>} : memref<1x1x8x128xf32, #tpu.memory_space<vmem>>, vector<1x1x8x128xf32>,
    return
  }
  func.func @transform_0(%arg0: i32, %arg1: i32) -> (i32, i32) {
    %c0_i32 = arith.constant 0 : i32
    return %arg0, %arg1 : i32, i32
  }
  func.func @transform_1(%arg0: i32, %arg1: i32) -> (i32, i32) {
    %c0_i32 = arith.constant 0 : i32
    return %arg0, %arg1 : i32, i32
  }
  func.func @transform_2(%arg0: i32, %arg1: i32) -> (i32, i32) {
    %c0_i32 = arith.constant 0 : i32
    %c0_i32_0 = arith.constant 0 : i32
    return %arg0, %c0_i32 : i32, i32
  }
  func.func @transform_3(%arg0: i32, %arg1: i32) -> (i32, i32) {
    %c0_i32 = arith.constant 0 : i32
    %c0_i32_0 = arith.constant 0 : i32
    return %arg0, %c0_i32 : i32, i32
  }
  func.func @transform_4(%arg0: i32, %arg1: i32) -> (i32, i32) {
    %c0_i32 = arith.constant 0 : i32
    %c0_i32_0 = arith.constant 0 : i32
    return %arg0, %c0_i32 : i32, i32
  }
  func.func @transform_5(%arg0: i32, %arg1: i32) -> (i32, i32, i32, i32) {
    %c0_i32 = arith.constant 0 : i32
    %c0_i32_0 = arith.constant 0 : i32
    %c0_i32_1 = arith.constant 0 : i32
    return %arg0, %arg1, %c0_i32, %c0_i32_0 : i32, i32, i32, i32
  }
}

</mosaic_0001>

<llo_original>
// kernel: tpu_custom_call.1
$region0: #{tpu_custom_call.1}
  #allocation0 [shape = 'u32[]', space=smem, size = 0x4, offset = 0x4, fixed_abs, tag = 'smem constant byte address 0x4 - core index']
  #allocation1 [shape = 'u32[144,128]{1,0:T(1,128)}', space=vmem, size = 0x12000, scoped, tag = 'internal scratch']
  %s0 = inlined_call_operand.vmem [shape: f32[64,32], index: 0, kind: input, shape index: {}]
  %s1 = inlined_call_operand.vmem [shape: f32[64,32], index: 1, kind: input, shape index: {}]
  %s2 = inlined_call_operand.vmem [shape: s32[64,1], index: 2, kind: input, shape index: {}]
  %s3 = inlined_call_operand.vmem [shape: f32[64,1], index: 3, kind: input, shape index: {}]
  %s4 = inlined_call_operand.vmem [shape: f32[64,1], index: 4, kind: input, shape index: {}]
  %s5 = inlined_call_operand.hbm [shape: f32[1,1,8,128], index: 5, kind: output, shape index: {}]
  %s6 = sld [smem:[#allocation0]]
  $region30: #{tpu_custom_call.1} parent=0
    _
  %s8 = ssub.s32 1, %s6
  %s9 = scalar_select 0, %s8, %s6
  $region1: #{tpu_custom_call.1} parent=0
    #allocation2 [shape = 'u8[4096]{0}', space=vmem, size = 0x1000, scoped, tag = 'output window, operand 0, single buffered']
    #allocation3 [shape = 's32[1]{0}', space=sflag, size = 0x4, scoped, tag = 'scoped memory for tpu_custom_call.1']
    %10 = vsyncpa [#allocation3], 0
    // Predicated region
    $region2: #{tpu_custom_call.1} parent=1 // pred_check
      _
    $region3: #{tpu_custom_call.1} parent=1 // pred_check_branch
      %12 = sbr.rel (0) target = $region5
    $region4: #{tpu_custom_call.1} parent=1 // pred_region
      _
    $region5: #{tpu_custom_call.1} parent=1 // pred_fallthru
      _
    // Predicated region
    $region6: #{tpu_custom_call.1} parent=1 // pred_check
      _
    $region7: #{tpu_custom_call.1} parent=1 // pred_check_branch
      %14 = sbr.rel (0) target = $region9
    $region8: #{tpu_custom_call.1} parent=1 // pred_region
      _
    $region9: #{tpu_custom_call.1} parent=1 // pred_fallthru
      _
    // Predicated region
    $region10: #{tpu_custom_call.1} parent=1 // pred_check
      _
    $region11: #{tpu_custom_call.1} parent=1 // pred_check_branch
      %16 = sbr.rel (0) target = $region13
    $region12: #{tpu_custom_call.1} parent=1 // pred_region
      _
    $region13: #{tpu_custom_call.1} parent=1 // pred_fallthru
      _
    // Predicated region
    $region14: #{tpu_custom_call.1} parent=1 // pred_check
      _
    $region15: #{tpu_custom_call.1} parent=1 // pred_check_branch
      %18 = sbr.rel (0) target = $region17
    $region16: #{tpu_custom_call.1} parent=1 // pred_region
      _
    $region17: #{tpu_custom_call.1} parent=1 // pred_fallthru
      _
    // Predicated region
    $region18: #{tpu_custom_call.1} parent=1 // pred_check
      _
    $region19: #{tpu_custom_call.1} parent=1 // pred_check_branch
      %20 = sbr.rel (0) target = $region21
    $region20: #{tpu_custom_call.1} parent=1 // pred_region
      _
    $region21: #{tpu_custom_call.1} parent=1 // pred_fallthru
      _
    %v21 = vld [vmem:[%s0] sm:$0xff]
    %v22 = vld [vmem:[%s0 + $0x8] sm:$0xff]
    %v23 = vld [vmem:[%s0 + $0x10] sm:$0xff]
    %v24 = vld [vmem:[%s0 + $0x18] sm:$0xff]
    %v25 = vld [vmem:[%s0 + $0x20] sm:$0xff]
    %v26 = vld [vmem:[%s0 + $0x28] sm:$0xff]
    %v27 = vld [vmem:[%s0 + $0x30] sm:$0xff]
    %v28 = vld [vmem:[%s0 + $0x38] sm:$0xff]
    %v29 = vld [vmem:[%s1] sm:$0xff]
    %v30 = vld [vmem:[%s1 + $0x8] sm:$0xff]
    %v31 = vld [vmem:[%s1 + $0x10] sm:$0xff]
    %v32 = vld [vmem:[%s1 + $0x18] sm:$0xff]
    %v33 = vld [vmem:[%s1 + $0x20] sm:$0xff]
    %v34 = vld [vmem:[%s1 + $0x28] sm:$0xff]
    %v35 = vld [vmem:[%s1 + $0x30] sm:$0xff]
    %v36 = vld [vmem:[%s1 + $0x38] sm:$0xff]
    %v37 = vld [vmem:[%s2] sm:$0xff]
    %v38 = vld [vmem:[%s2 + $0x8] sm:$0xff]
    %v39 = vld [vmem:[%s2 + $0x10] sm:$0xff]
    %v40 = vld [vmem:[%s2 + $0x18] sm:$0xff]
    %v41 = vld [vmem:[%s2 + $0x20] sm:$0xff]
    %v42 = vld [vmem:[%s2 + $0x28] sm:$0xff]
    %v43 = vld [vmem:[%s2 + $0x30] sm:$0xff]
    %v44 = vld [vmem:[%s2 + $0x38] sm:$0xff]
    %v45 = vld [vmem:[%s3] sm:$0xff]
    %v46 = vld [vmem:[%s3 + $0x8] sm:$0xff]
    %v47 = vld [vmem:[%s3 + $0x10] sm:$0xff]
    %v48 = vld [vmem:[%s3 + $0x18] sm:$0xff]
    %v49 = vld [vmem:[%s3 + $0x20] sm:$0xff]
    %v50 = vld [vmem:[%s3 + $0x28] sm:$0xff]
    %v51 = vld [vmem:[%s3 + $0x30] sm:$0xff]
    %v52 = vld [vmem:[%s3 + $0x38] sm:$0xff]
    %v53 = vld [vmem:[%s4] sm:$0xff]
    %v54 = vld [vmem:[%s4 + $0x8] sm:$0xff]
    %v55 = vld [vmem:[%s4 + $0x10] sm:$0xff]
    %v56 = vld [vmem:[%s4 + $0x18] sm:$0xff]
    %v57 = vld [vmem:[%s4 + $0x20] sm:$0xff]
    %v58 = vld [vmem:[%s4 + $0x28] sm:$0xff]
    %v59 = vld [vmem:[%s4 + $0x30] sm:$0xff]
    %v60 = vld [vmem:[%s4 + $0x38] sm:$0xff]
    %vm61 = vcmp.ge.f32.partialorder %v29, 0.1
    %vm62 = vcmp.ge.f32.partialorder %v30, 0.1
    %vm63 = vcmp.ge.f32.partialorder %v31, 0.1
    %vm64 = vcmp.ge.f32.partialorder %v32, 0.1
    %vm65 = vcmp.ge.f32.partialorder %v33, 0.1
    %vm66 = vcmp.ge.f32.partialorder %v34, 0.1
    %vm67 = vcmp.ge.f32.partialorder %v35, 0.1
    %vm68 = vcmp.ge.f32.partialorder %v36, 0.1
    %v69 = vsel %vm61, %v29, 0.0
    %v70 = vsel %vm62, %v30, 0.0
    %v71 = vsel %vm63, %v31, 0.0
    %v72 = vsel %vm64, %v32, 0.0
    %v73 = vsel %vm65, %v33, 0.0
    %v74 = vsel %vm66, %v34, 0.0
    %v75 = vsel %vm67, %v35, 0.0
    %v76 = vsel %vm68, %v36, 0.0
    %v77 = vsub.f32 %v69, 1.0
    %v78 = vsub.f32 %v70, 1.0
    %v79 = vsub.f32 %v71, 1.0
    %v80 = vsub.f32 %v72, 1.0
    %v81 = vsub.f32 %v73, 1.0
    %v82 = vsub.f32 %v74, 1.0
    %v83 = vsub.f32 %v75, 1.0
    %v84 = vsub.f32 %v76, 1.0
    %v85 = vmul.f32 %v77, 3.3333333
    %v86 = vmul.f32 %v78, 3.3333333
    %v87 = vmul.f32 %v79, 3.3333333
    %v88 = vmul.f32 %v80, 3.3333333
    %v89 = vmul.f32 %v81, 3.3333333
    %v90 = vmul.f32 %v82, 3.3333333
    %v91 = vmul.f32 %v83, 3.3333333
    %v92 = vmul.f32 %v84, 3.3333333
    %v93 = vmul.f32 %v85, 1.442695
    %v94 = vpow.pop %v93
    %v95 = vmul.f32 %v86, 1.442695
    %v96 = vpow.pop %v95
    %v97 = vmul.f32 %v87, 1.442695
    %v98 = vpow.pop %v97
    %v99 = vmul.f32 %v88, 1.442695
    %v100 = vpow.pop %v99
    %v101 = vmul.f32 %v89, 1.442695
    %v102 = vpow.pop %v101
    %v103 = vmul.f32 %v90, 1.442695
    %v104 = vpow.pop %v103
    %v105 = vmul.f32 %v91, 1.442695
    %v106 = vpow.pop %v105
    %v107 = vmul.f32 %v92, 1.442695
    %v108 = vpow.pop %v107
    %vm109 = vcmp.lt.f32.partialorder %v69, 1.0
    %vm110 = vcmp.lt.f32.partialorder %v70, 1.0
    %vm111 = vcmp.lt.f32.partialorder %v71, 1.0
    %vm112 = vcmp.lt.f32.partialorder %v72, 1.0
    %vm113 = vcmp.lt.f32.partialorder %v73, 1.0
    %vm114 = vcmp.lt.f32.partialorder %v74, 1.0
    %vm115 = vcmp.lt.f32.partialorder %v75, 1.0
    %vm116 = vcmp.lt.f32.partialorder %v76, 1.0
    %v117 = vsel %vm109, %v94, 0.0
    %v118 = vsel %vm110, %v96, 0.0
    %v119 = vsel %vm111, %v98, 0.0
    %v120 = vsel %vm112, %v100, 0.0
    %v121 = vsel %vm113, %v102, 0.0
    %v122 = vsel %vm114, %v104, 0.0
    %v123 = vsel %vm115, %v106, 0.0
    %v124 = vsel %vm116, %v108, 0.0
    %126 = vset.pattern.permute.xlu0 0
    %127 = vperm.xlu0 %126, %v45
    %v128 = vpop.permute.xlu0 %127
    %131 = vset.pattern.permute.xlu0 0
    %132 = vperm.xlu0 %131, %v46
    %v133 = vpop.permute.xlu0 %132
    %136 = vset.pattern.permute.xlu0 0
    %137 = vperm.xlu0 %136, %v47
    %v138 = vpop.permute.xlu0 %137
    %141 = vset.pattern.permute.xlu0 0
    %142 = vperm.xlu0 %141, %v48
    %v143 = vpop.permute.xlu0 %142
    %146 = vset.pattern.permute.xlu0 0
    %147 = vperm.xlu0 %146, %v49
    %v148 = vpop.permute.xlu0 %147
    %151 = vset.pattern.permute.xlu0 0
    %152 = vperm.xlu0 %151, %v50
    %v153 = vpop.permute.xlu0 %152
    %156 = vset.pattern.permute.xlu0 0
    %157 = vperm.xlu0 %156, %v51
    %v158 = vpop.permute.xlu0 %157
    %161 = vset.pattern.permute.xlu0 0
    %162 = vperm.xlu0 %161, %v52
    %v163 = vpop.permute.xlu0 %162
    %v165 = vmul.f32 %v117, %v128
    %v166 = vmul.f32 %v118, %v133
    %v167 = vmul.f32 %v119, %v138
    %v168 = vmul.f32 %v120, %v143
    %v169 = vmul.f32 %v121, %v148
    %v170 = vmul.f32 %v122, %v153
    %v171 = vmul.f32 %v123, %v158
    %v172 = vmul.f32 %v124, %v163
    %v173 = vmul.f32 %v21, %v165
    %v174 = vmul.f32 %v22, %v166
    %v175 = vmul.f32 %v23, %v167
    %v176 = vmul.f32 %v24, %v168
    %v177 = vmul.f32 %v25, %v169
    %v178 = vmul.f32 %v26, %v170
    %v179 = vmul.f32 %v27, %v171
    %v180 = vmul.f32 %v28, %v172
    %182 = vset.pattern.permute.xlu0 0
    %183 = vperm.xlu0 %182, %v53
    %v184 = vpop.permute.xlu0 %183
    %187 = vset.pattern.permute.xlu0 0
    %188 = vperm.xlu0 %187, %v54
    %v189 = vpop.permute.xlu0 %188
    %192 = vset.pattern.permute.xlu0 0
    %193 = vperm.xlu0 %192, %v55
    %v194 = vpop.permute.xlu0 %193
    %197 = vset.pattern.permute.xlu0 0
    %198 = vperm.xlu0 %197, %v56
    %v199 = vpop.permute.xlu0 %198
    %202 = vset.pattern.permute.xlu0 0
    %203 = vperm.xlu0 %202, %v57
    %v204 = vpop.permute.xlu0 %203
    %207 = vset.pattern.permute.xlu0 0
    %208 = vperm.xlu0 %207, %v58
    %v209 = vpop.permute.xlu0 %208
    %212 = vset.pattern.permute.xlu0 0
    %213 = vperm.xlu0 %212, %v59
    %v214 = vpop.permute.xlu0 %213
    %217 = vset.pattern.permute.xlu0 0
    %218 = vperm.xlu0 %217, %v60
    %v219 = vpop.permute.xlu0 %218
    %v221 = vmul.f32 %v117, %v184
    %v222 = vmul.f32 %v118, %v189
    %v223 = vmul.f32 %v119, %v194
    %v224 = vmul.f32 %v120, %v199
    %v225 = vmul.f32 %v121, %v204
    %v226 = vmul.f32 %v122, %v209
    %v227 = vmul.f32 %v123, %v214
    %v228 = vmul.f32 %v124, %v219
    %v229 = vmul.f32 %v221, %v117
    %v230 = vmul.f32 %v222, %v118
    %v231 = vmul.f32 %v223, %v119
    %v232 = vmul.f32 %v224, %v120
    %v233 = vmul.f32 %v225, %v121
    %v234 = vmul.f32 %v226, %v122
    %v235 = vmul.f32 %v227, %v123
    %v236 = vmul.f32 %v228, %v124
    %v237 = vlaneseq
    %v238 = vand.u32 %v237, 127
    %s239 = smul.u32 0, 32
    %v240 = vstv %s239
    %v241 = vadd.s32 %v238, %v240
    %242 = vset.pattern.permute.xlu0 0
    %243 = vperm.xlu0 %242, %v37
    %v244 = vpop.permute.xlu0 %243
    %245 = vset.pattern.permute.xlu0 0
    %246 = vperm.xlu0 %245, %v38
    %v247 = vpop.permute.xlu0 %246
    %248 = vset.pattern.permute.xlu0 0
    %249 = vperm.xlu0 %248, %v39
    %v250 = vpop.permute.xlu0 %249
    %251 = vset.pattern.permute.xlu0 0
    %252 = vperm.xlu0 %251, %v40
    %v253 = vpop.permute.xlu0 %252
    %254 = vset.pattern.permute.xlu0 0
    %255 = vperm.xlu0 %254, %v41
    %v256 = vpop.permute.xlu0 %255
    %257 = vset.pattern.permute.xlu0 0
    %258 = vperm.xlu0 %257, %v42
    %v259 = vpop.permute.xlu0 %258
    %260 = vset.pattern.permute.xlu0 0
    %261 = vperm.xlu0 %260, %v43
    %v262 = vpop.permute.xlu0 %261
    %263 = vset.pattern.permute.xlu0 0
    %264 = vperm.xlu0 %263, %v44
    %v265 = vpop.permute.xlu0 %264
    %vm266 = vcmp.eq.s32.totalorder %v241, %v244
    %vm267 = vcmp.eq.s32.totalorder %v241, %v247
    %vm268 = vcmp.eq.s32.totalorder %v241, %v250
    %vm269 = vcmp.eq.s32.totalorder %v241, %v253
    %vm270 = vcmp.eq.s32.totalorder %v241, %v256
    %vm271 = vcmp.eq.s32.totalorder %v241, %v259
    %vm272 = vcmp.eq.s32.totalorder %v241, %v262
    %vm273 = vcmp.eq.s32.totalorder %v241, %v265
    %v274 = vsel %vm266, %v21, 0.0
    %v275 = vsel %vm267, %v22, 0.0
    %v276 = vsel %vm268, %v23, 0.0
    %v277 = vsel %vm269, %v24, 0.0
    %v278 = vsel %vm270, %v25, 0.0
    %v279 = vsel %vm271, %v26, 0.0
    %v280 = vsel %vm272, %v27, 0.0
    %v281 = vsel %vm273, %v28, 0.0
    %v282 = vmul.f32 %v274, %v128
    %v283 = vmul.f32 %v275, %v133
    %v284 = vmul.f32 %v276, %v138
    %v285 = vmul.f32 %v277, %v143
    %v286 = vmul.f32 %v278, %v148
    %v287 = vmul.f32 %v279, %v153
    %v288 = vmul.f32 %v280, %v158
    %v289 = vmul.f32 %v281, %v163
    %vm290 = vcmask 261120
    %v291 = vsel %vm290, %v173, 0.0
    %v292 = vsel %vm290, %v174, 0.0
    %v293 = vadd.f32 %v291, %v292
    %v294 = vsel %vm290, %v175, 0.0
    %v295 = vadd.f32 %v293, %v294
    %v296 = vsel %vm290, %v176, 0.0
    %v297 = vadd.f32 %v295, %v296
    %v298 = vsel %vm290, %v177, 0.0
    %v299 = vadd.f32 %v297, %v298
    %v300 = vsel %vm290, %v178, 0.0
    %v301 = vadd.f32 %v299, %v300
    %v302 = vsel %vm290, %v179, 0.0
    %v303 = vadd.f32 %v301, %v302
    %v304 = vsel %vm290, %v180, 0.0
    %v305 = vadd.f32 %v303, %v304
    %v306 = vrot.slane %v305, 4
    %v307 = vadd.f32 %v305, %v306
    %v308 = vrot.slane %v307, 2
    %v309 = vadd.f32 %v307, %v308
    %v310 = vrot.slane %v309, 1
    %v311 = vadd.f32 %v309, %v310
    %v312 = vsel %vm290, %v311, 0.0
    %313 = vadd.xlane.f32.xlu0 %v312
    %v314 = vpop.xlane.xlu0 %313
    %vm315 = vcmp.eq.s32.totalorder %v238, 0
    %v316 = vsel %vm315, %v314, 0.0
    %v317 = vsel %vm290, %v165, 0.0
    %v318 = vsel %vm290, %v166, 0.0
    %v319 = vadd.f32 %v317, %v318
    %v320 = vsel %vm290, %v167, 0.0
    %v321 = vadd.f32 %v319, %v320
    %v322 = vsel %vm290, %v168, 0.0
    %v323 = vadd.f32 %v321, %v322
    %v324 = vsel %vm290, %v169, 0.0
    %v325 = vadd.f32 %v323, %v324
    %v326 = vsel %vm290, %v170, 0.0
    %v327 = vadd.f32 %v325, %v326
    %v328 = vsel %vm290, %v171, 0.0
    %v329 = vadd.f32 %v327, %v328
    %v330 = vsel %vm290, %v172, 0.0
    %v331 = vadd.f32 %v329, %v330
    %v332 = vrot.slane %v331, 4
    %v333 = vadd.f32 %v331, %v332
    %v334 = vrot.slane %v333, 2
    %v335 = vadd.f32 %v333, %v334
    %v336 = vrot.slane %v335, 1
    %v337 = vadd.f32 %v335, %v336
    %v338 = vsel %vm290, %v337, 0.0
    %339 = vadd.xlane.f32.xlu0 %v338
    %v340 = vpop.xlane.xlu0 %339
    %v341 = vsel %vm315, %v340, 0.0
    %v342 = vsel %vm290, %v221, 0.0
    %v343 = vsel %vm290, %v222, 0.0
    %v344 = vadd.f32 %v342, %v343
    %v345 = vsel %vm290, %v223, 0.0
    %v346 = vadd.f32 %v344, %v345
    %v347 = vsel %vm290, %v224, 0.0
    %v348 = vadd.f32 %v346, %v347
    %v349 = vsel %vm290, %v225, 0.0
    %v350 = vadd.f32 %v348, %v349
    %v351 = vsel %vm290, %v226, 0.0
    %v352 = vadd.f32 %v350, %v351
    %v353 = vsel %vm290, %v227, 0.0
    %v354 = vadd.f32 %v352, %v353
    %v355 = vsel %vm290, %v228, 0.0
    %v356 = vadd.f32 %v354, %v355
    %v357 = vrot.slane %v356, 4
    %v358 = vadd.f32 %v356, %v357
    %v359 = vrot.slane %v358, 2
    %v360 = vadd.f32 %v358, %v359
    %v361 = vrot.slane %v360, 1
    %v362 = vadd.f32 %v360, %v361
    %v363 = vsel %vm290, %v362, 0.0
    %364 = vadd.xlane.f32.xlu0 %v363
    %v365 = vpop.xlane.xlu0 %364
    %v366 = vsel %vm315, %v365, 0.0
    %v367 = vsel %vm290, %v229, 0.0
    %v368 = vsel %vm290, %v230, 0.0
    %v369 = vadd.f32 %v367, %v368
    %v370 = vsel %vm290, %v231, 0.0
    %v371 = vadd.f32 %v369, %v370
    %v372 = vsel %vm290, %v232, 0.0
    %v373 = vadd.f32 %v371, %v372
    %v374 = vsel %vm290, %v233, 0.0
    %v375 = vadd.f32 %v373, %v374
    %v376 = vsel %vm290, %v234, 0.0
    %v377 = vadd.f32 %v375, %v376
    %v378 = vsel %vm290, %v235, 0.0
    %v379 = vadd.f32 %v377, %v378
    %v380 = vsel %vm290, %v236, 0.0
    %v381 = vadd.f32 %v379, %v380
    %v382 = vrot.slane %v381, 4
    %v383 = vadd.f32 %v381, %v382
    %v384 = vrot.slane %v383, 2
    %v385 = vadd.f32 %v383, %v384
    %v386 = vrot.slane %v385, 1
    %v387 = vadd.f32 %v385, %v386
    %v388 = vsel %vm290, %v387, 0.0
    %389 = vadd.xlane.f32.xlu0 %v388
    %v390 = vpop.xlane.xlu0 %389
    %v391 = vsel %vm315, %v390, 0.0
    %v392 = vsel %vm290, %v282, 0.0
    %v393 = vsel %vm290, %v283, 0.0
    %v394 = vadd.f32 %v392, %v393
    %v395 = vsel %vm290, %v284, 0.0
    %v396 = vadd.f32 %v394, %v395
    %v397 = vsel %vm290, %v285, 0.0
    %v398 = vadd.f32 %v396, %v397
    %v399 = vsel %vm290, %v286, 0.0
    %v400 = vadd.f32 %v398, %v399
    %v401 = vsel %vm290, %v287, 0.0
    %v402 = vadd.f32 %v400, %v401
    %v403 = vsel %vm290, %v288, 0.0
    %v404 = vadd.f32 %v402, %v403
    %v405 = vsel %vm290, %v289, 0.0
    %v406 = vadd.f32 %v404, %v405
    %v407 = vrot.slane %v406, 4
    %v408 = vadd.f32 %v406, %v407
    %v409 = vrot.slane %v408, 2
    %v410 = vadd.f32 %v408, %v409
    %v411 = vrot.slane %v410, 1
    %v412 = vadd.f32 %v410, %v411
    %v413 = vsel %vm290, %v412, 0.0
    %414 = vadd.xlane.f32.xlu0 %v413
    %v415 = vpop.xlane.xlu0 %414
    %v416 = vsel %vm315, %v415, 0.0
    %vm417 = vcmask 1040384
    %v418 = vsel %vm417, %v316, %v341
    %vm419 = vcmask 1041408
    %v420 = vsel %vm419, %v418, %v366
    %vm421 = vcmask 1042432
    %v422 = vsel %vm421, %v420, %v391
    %vm423 = vcmask 1043456
    %v424 = vsel %vm423, %v422, %v416
    %vm425 = vcmask 1044480
    %v426 = vsel %vm425, %v424, 0.0
    %vm427 = vcmask 1045504
    %v428 = vsel %vm427, %v426, 0.0
    %vm429 = vcmask 1046528
    %v430 = vsel %vm429, %v428, 0.0
    %431 = vst [vmem:[#allocation2] sm:$0xff] %v430
    // Predicated region
    $region22: #{tpu_custom_call.1} parent=1 // pred_check
      _
    $region23: #{tpu_custom_call.1} parent=1 // pred_check_branch
      %433 = sbr.rel (0) target = $region25
    $region24: #{tpu_custom_call.1} parent=1 // pred_region
      %s435 = ssub.s32 128, 128
      %436 = vsyncadd [#allocation3], %s435
      %s438 = sshll.u32 [#allocation2], 4
      %s439 = int_to_ptr.vmem [resolvable:$true] %s438
      %441 = dma.vmem_to_hbm [thread:$0]  %s439, 128, %s5, [#allocation3]
    $region25: #{tpu_custom_call.1} parent=1 // pred_fallthru
      _
    // Predicated region
    $region26: #{tpu_custom_call.1} parent=1 // pred_check
      _
    $region27: #{tpu_custom_call.1} parent=1 // pred_check_branch
      %443 = sbr.rel (0) target = $region29
    $region28: #{tpu_custom_call.1} parent=1 // pred_region
      %444 = dma.done [#allocation3], 128
    $region29: #{tpu_custom_call.1} parent=1 // pred_fallthru
      _
    %445 = vsyncpa [#allocation3], 1

</llo_original>
